<compile_context>
chip_gen: v5e
topology: v5e:2x2
jax: 0.10.0
libtpu: 0.0.40
codegen_flags: <defaults>
</compile_context>

<pallas_src>
import numpy as np

import jax
import jax.numpy as jnp
from jax import lax
from jax.experimental import pallas as pl
from jax.experimental.pallas import tpu as pltpu

_OUT_LANES = 128      # lane-dense output padding (sliced back to 1 column in the wrapper)
_UNROLL_C_MAX = 32    # static-unroll threshold for the channel contraction


def _round_up(x: int, m: int) -> int:
    return ((x + m - 1) // m) * m


def _channel_contract(x_ref, s_ref, c: int):
    """sum_c s[c] * x[c]  for x_ref (C, TB, W) VMEM, s_ref (C,) SMEM  ->  (TB, W) f32."""
    if c <= _UNROLL_C_MAX:
        acc = s_ref[0] * x_ref[0].astype(jnp.float32)
        for i in range(1, c):                        # static unroll (C known at trace time)
            acc = acc + s_ref[i] * x_ref[i].astype(jnp.float32)
        return acc

    # Large C: rolled loop keeps code size and vreg live ranges bounded.
    def body(i, acc):
        return acc + s_ref[i] * x_ref[i].astype(jnp.float32)

    init = jnp.zeros(x_ref.shape[1:], jnp.float32)
    return lax.fori_loop(0, c, body, init, unroll=8)


def _cbp_kernel(s1_ref, s2_ref, x1_ref, x2_ref, out_ref):
    """One TB-row batch block per grid step.

    s1_ref, s2_ref : SMEM (C1,), (C2,)   column 0 of each sketch matrix (scalars)
    x1_ref, x2_ref : VMEM (C, TB, W)     spatial row h=0 of x1/x2, channel-major
    out_ref        : VMEM (TB, 128)      lane-broadcast sum-pooled scalar per batch row
    """
    c1 = x1_ref.shape[0]
    c2 = x2_ref.shape[0]

    # Count-sketch projection onto output-dim column 0 (== matmul(sketch) followed by the
    # fft(n=1) crop; a length-1 DFT is the identity and its imaginary part is 0).
    p1 = _channel_contract(x1_ref, s1_ref, c1)       # (TB, W) f32
    p2 = _channel_contract(x2_ref, s2_ref, c2)       # (TB, W) f32

    # Complex product (imag == 0), exact irfft + sum(dim=1) collapse (== take the DC bin),
    # then the W sum of sum_pool.
    r = jnp.sum(p1 * p2, axis=-1, keepdims=True)     # (TB, 1)
    out_ref[...] = jnp.broadcast_to(r, out_ref.shape)


def compact_bilinear_pooling(x1, x2, sketch_matrix1, sketch_matrix2, *,
                             sum_pool=True, block_batch=None):
    """Forward pass of CompactBilinearPooling.

    x1: (N, C1, H, W), x2: (N, C2, H, W), sketch_matrix{1,2}: (C{1,2}, output_dim).
    Returns (N, 1) for sum_pool=True (the module default).
    """
    if not sum_pool:
        # TODO(synk): sum_pool=False branch (return cbp.permute(0, 3, 1, 2)) not implemented.
        raise NotImplementedError("only the default sum_pool=True path is implemented")

    n, c1, h, w = x1.shape
    n2, c2, h2, w2 = x2.shape
    assert (n, h, w) == (n2, h2, w2), "x1 / x2 batch and spatial dims must match"
    assert sketch_matrix1.shape[0] == c1 and sketch_matrix2.shape[0] == c2
    del h2, w2, n2

    # Only column 0 of each sketch matrix reaches the output (fft(p, 1) == n=1 crop).
    s1col = sketch_matrix1[:, 0].astype(jnp.float32)          # (C1,)
    s2col = sketch_matrix2[:, 0].astype(jnp.float32)          # (C2,)

    # Only spatial row h=0 reaches the output (exact irfft+sum collapse); slice it in the
    # wrapper so kernel HBM traffic drops by ~H x.  Keep the native dtype (no f32 copy);
    # channel-major layout so each per-channel slab is a dense (TB, W) tile.
    x1r = jnp.transpose(x1[:, :, 0, :], (1, 0, 2))            # (C1, N, W), native dtype
    x2r = jnp.transpose(x2[:, :, 0, :], (1, 0, 2))            # (C2, N, W)

    # TB batch rows per grid step: largest multiple of 8 keeping the double-buffered input
    # blocks within a conservative VMEM budget (fits every generation's default scoped VMEM),
    # clamped so tiny batches are not over-padded.
    itemsize = jnp.dtype(x1.dtype).itemsize
    if block_batch is None:
        vmem_budget = 8 * 1024 * 1024                          # both inputs x 2 pipeline buffers
        per_row = max(1, (c1 + c2) * w * itemsize * 2)
        block_batch = vmem_budget // per_row
    tb = max(8, (int(block_batch) // 8) * 8)
    tb = min(tb, 256, _round_up(n, 8))
    n_pad = _round_up(n, tb)

    if n_pad != n:
        x1r = jnp.pad(x1r, ((0, 0), (0, n_pad - n), (0, 0)))
        x2r = jnp.pad(x2r, ((0, 0), (0, n_pad - n), (0, 0)))

    out_padded = pl.pallas_call(
        _cbp_kernel,
        out_shape=jax.ShapeDtypeStruct((n_pad, _OUT_LANES), jnp.float32),
        grid_spec=pltpu.PrefetchScalarGridSpec(
            num_scalar_prefetch=0,
            grid=(n_pad // tb,),                               # TB batch rows per step
            in_specs=[
                pl.BlockSpec(memory_space=pltpu.MemorySpace.SMEM),    # s1col (scalars)
                pl.BlockSpec(memory_space=pltpu.MemorySpace.SMEM),    # s2col (scalars)
                pl.BlockSpec((c1, tb, w), lambda b: (0, b, 0)),
                pl.BlockSpec((c2, tb, w), lambda b: (0, b, 0)),
            ],
            out_specs=pl.BlockSpec((tb, _OUT_LANES), lambda b: (b, 0)),
        ),
        compiler_params=pltpu.CompilerParams(
            dimension_semantics=("parallel",)),                # independent batch blocks
    )(s1col, s2col, x1r, x2r)

    return out_padded[:n, :1].astype(x1.dtype)                 # (N, 1)


def _reference_forward(x1, x2, sk1, sk2):
    """Host numpy float64 reference, literal translation of the PyTorch forward."""
    x1 = np.asarray(x1, np.float64)
    x2 = np.asarray(x2, np.float64)
    sk1 = np.asarray(sk1, np.float64)
    sk2 = np.asarray(sk2, np.float64)
    p1 = np.einsum("nchw,cd->nhwd", x1, sk1)
    p2 = np.einsum("nchw,cd->nhwd", x2, sk2)
    # torch.fft.fft(p, 1): n=1 along the last dim -> crop to first element, length-1 DFT.
    f1 = np.fft.fft(p1[..., :1], axis=-1)
    f2 = np.fft.fft(p2[..., :1], axis=-1)
    re = f1.real * f2.real - f1.imag * f2.imag
    im = f1.real * f2.imag + f1.imag * f2.real
    prod = re + 1j * im                                   # (N, H, W, 1)
    h = prod.shape[1]
    prod = prod[:, : h // 2 + 1]                          # irfft(n=h) crops the one-sided spectrum
    cbp = np.fft.irfft(prod, n=h, axis=1)                 # (N, H, W, 1)
    return cbp.sum(axis=1).sum(axis=1)                    # (N, 1)


if __name__ == "__main__":
    N, C1, C2, H, W, D = 2, 4, 4, 16, 16, 128

    key = jax.random.PRNGKey(0)
    k1, k2, k3, k4 = jax.random.split(key, 4)
    x1 = jax.random.normal(k1, (N, C1, H, W), jnp.float32)
    x2 = jax.random.normal(k2, (N, C2, H, W), jnp.float32)
    # The module stores its count-sketch matrices as dense nn.Parameters; dense random
    # values exercise the identical forward math and (unlike a true count sketch with
    # D >> C, whose column 0 is almost surely all-zero) give a non-degenerate self-check.
    sketch1 = jax.random.normal(k3, (C1, D), jnp.float32)
    sketch2 = jax.random.normal(k4, (C2, D), jnp.float32)

    out = compact_bilinear_pooling(x1, x2, sketch1, sketch2)
    out = jax.block_until_ready(out)
    assert out.shape == (N, 1)
    np.testing.assert_allclose(np.asarray(out),
                               _reference_forward(x1, x2, sketch1, sketch2),
                               rtol=1e-3, atol=1e-3)

    # Multi-step grid + batch-padding path (N not a multiple of the batch block).
    N2 = 20
    k5, k6 = jax.random.split(jax.random.PRNGKey(1), 2)
    y1 = jax.random.normal(k5, (N2, C1, H, W), jnp.float32)
    y2 = jax.random.normal(k6, (N2, C2, H, W), jnp.float32)
    out2 = compact_bilinear_pooling(y1, y2, sketch1, sketch2, block_batch=8)
    out2 = jax.block_until_ready(out2)
    assert out2.shape == (N2, 1)
    np.testing.assert_allclose(np.asarray(out2),
                               _reference_forward(y1, y2, sketch1, sketch2),
                               rtol=1e-3, atol=1e-3)

    print("KERNEL_OK")
</pallas_src>

<mosaic_0001>
module attributes {stable_mosaic.version = 11 : i64} {
  func.func @_cbp_kernel(%arg0: i32, %arg1: memref<4xf32, #tpu.memory_space<smem>>, %arg2: memref<4xf32, #tpu.memory_space<smem>>, %arg3: memref<4x8x16xf32, #tpu.memory_space<vmem>>, %arg4: memref<4x8x16xf32, #tpu.memory_space<vmem>>, %arg5: memref<8x128xf32, #tpu.memory_space<vmem>>) attributes {dimension_semantics = [#tpu.dimension_semantics<parallel>], iteration_bounds = array<i64: 1>, scalar_prefetch = 0 : i64, scratch_operands = 0 : i64, tpu.core_type = #tpu.core_type<tc>, window_params = [{transform_indices = @transform_0, window_bounds = array<i64: 4>}, {transform_indices = @transform_1, window_bounds = array<i64: 4>}, {transform_indices = @transform_2, window_bounds = array<i64: 4, 8, 16>}, {transform_indices = @transform_3, window_bounds = array<i64: 4, 8, 16>}, {transform_indices = @transform_4, window_bounds = array<i64: 8, 128>}]} {
    %c0 = arith.constant 0 : index
    %0 = memref.load %arg1[%c0] : memref<4xf32, #tpu.memory_space<smem>>
    %c0_0 = arith.constant 0 : index
    %c0_1 = arith.constant 0 : index
    %c0_2 = arith.constant 0 : index
    %1 = vector.load %arg3[%c0_0, %c0_1, %c0_2] : memref<4x8x16xf32, #tpu.memory_space<vmem>>, vector<1x8x16xf32>
    %2 = vector.shape_cast %1 : vector<1x8x16xf32> to vector<8x16xf32>
    %3 = vector.broadcast %0 : f32 to vector<8x16xf32>
    %4 = arith.mulf %3, %2 : vector<8x16xf32>
    %c1 = arith.constant 1 : index
    %5 = memref.load %arg1[%c1] : memref<4xf32, #tpu.memory_space<smem>>
    %c1_3 = arith.constant 1 : index
    %c0_4 = arith.constant 0 : index
    %c0_5 = arith.constant 0 : index
    %6 = vector.load %arg3[%c1_3, %c0_4, %c0_5] : memref<4x8x16xf32, #tpu.memory_space<vmem>>, vector<1x8x16xf32>
    %7 = vector.shape_cast %6 : vector<1x8x16xf32> to vector<8x16xf32>
    %8 = vector.broadcast %5 : f32 to vector<8x16xf32>
    %9 = arith.mulf %8, %7 : vector<8x16xf32>
    %10 = arith.addf %4, %9 : vector<8x16xf32>
    %c2 = arith.constant 2 : index
    %11 = memref.load %arg1[%c2] : memref<4xf32, #tpu.memory_space<smem>>
    %c2_6 = arith.constant 2 : index
    %c0_7 = arith.constant 0 : index
    %c0_8 = arith.constant 0 : index
    %12 = vector.load %arg3[%c2_6, %c0_7, %c0_8] : memref<4x8x16xf32, #tpu.memory_space<vmem>>, vector<1x8x16xf32>
    %13 = vector.shape_cast %12 : vector<1x8x16xf32> to vector<8x16xf32>
    %14 = vector.broadcast %11 : f32 to vector<8x16xf32>
    %15 = arith.mulf %14, %13 : vector<8x16xf32>
    %16 = arith.addf %10, %15 : vector<8x16xf32>
    %c3 = arith.constant 3 : index
    %17 = memref.load %arg1[%c3] : memref<4xf32, #tpu.memory_space<smem>>
    %c3_9 = arith.constant 3 : index
    %c0_10 = arith.constant 0 : index
    %c0_11 = arith.constant 0 : index
    %18 = vector.load %arg3[%c3_9, %c0_10, %c0_11] : memref<4x8x16xf32, #tpu.memory_space<vmem>>, vector<1x8x16xf32>
    %19 = vector.shape_cast %18 : vector<1x8x16xf32> to vector<8x16xf32>
    %20 = vector.broadcast %17 : f32 to vector<8x16xf32>
    %21 = arith.mulf %20, %19 : vector<8x16xf32>
    %22 = arith.addf %16, %21 : vector<8x16xf32>
    %c0_12 = arith.constant 0 : index
    %23 = memref.load %arg2[%c0_12] : memref<4xf32, #tpu.memory_space<smem>>
    %c0_13 = arith.constant 0 : index
    %c0_14 = arith.constant 0 : index
    %c0_15 = arith.constant 0 : index
    %24 = vector.load %arg4[%c0_13, %c0_14, %c0_15] : memref<4x8x16xf32, #tpu.memory_space<vmem>>, vector<1x8x16xf32>
    %25 = vector.shape_cast %24 : vector<1x8x16xf32> to vector<8x16xf32>
    %26 = vector.broadcast %23 : f32 to vector<8x16xf32>
    %27 = arith.mulf %26, %25 : vector<8x16xf32>
    %c1_16 = arith.constant 1 : index
    %28 = memref.load %arg2[%c1_16] : memref<4xf32, #tpu.memory_space<smem>>
    %c1_17 = arith.constant 1 : index
    %c0_18 = arith.constant 0 : index
    %c0_19 = arith.constant 0 : index
    %29 = vector.load %arg4[%c1_17, %c0_18, %c0_19] : memref<4x8x16xf32, #tpu.memory_space<vmem>>, vector<1x8x16xf32>
    %30 = vector.shape_cast %29 : vector<1x8x16xf32> to vector<8x16xf32>
    %31 = vector.broadcast %28 : f32 to vector<8x16xf32>
    %32 = arith.mulf %31, %30 : vector<8x16xf32>
    %33 = arith.addf %27, %32 : vector<8x16xf32>
    %c2_20 = arith.constant 2 : index
    %34 = memref.load %arg2[%c2_20] : memref<4xf32, #tpu.memory_space<smem>>
    %c2_21 = arith.constant 2 : index
    %c0_22 = arith.constant 0 : index
    %c0_23 = arith.constant 0 : index
    %35 = vector.load %arg4[%c2_21, %c0_22, %c0_23] : memref<4x8x16xf32, #tpu.memory_space<vmem>>, vector<1x8x16xf32>
    %36 = vector.shape_cast %35 : vector<1x8x16xf32> to vector<8x16xf32>
    %37 = vector.broadcast %34 : f32 to vector<8x16xf32>
    %38 = arith.mulf %37, %36 : vector<8x16xf32>
    %39 = arith.addf %33, %38 : vector<8x16xf32>
    %c3_24 = arith.constant 3 : index
    %40 = memref.load %arg2[%c3_24] : memref<4xf32, #tpu.memory_space<smem>>
    %c3_25 = arith.constant 3 : index
    %c0_26 = arith.constant 0 : index
    %c0_27 = arith.constant 0 : index
    %41 = vector.load %arg4[%c3_25, %c0_26, %c0_27] : memref<4x8x16xf32, #tpu.memory_space<vmem>>, vector<1x8x16xf32>
    %42 = vector.shape_cast %41 : vector<1x8x16xf32> to vector<8x16xf32>
    %43 = vector.broadcast %40 : f32 to vector<8x16xf32>
    %44 = arith.mulf %43, %42 : vector<8x16xf32>
    %45 = arith.addf %39, %44 : vector<8x16xf32>
    %46 = arith.mulf %22, %45 : vector<8x16xf32>
    %cst = arith.constant dense<0.000000e+00> : vector<8xf32>
    %47 = vector.multi_reduction <add>, %46, %cst [1] : vector<8x16xf32> to vector<8xf32>
    %48 = vector.shape_cast %47 : vector<8xf32> to vector<8x1xf32>
    %49 = vector.shape_cast %48 : vector<8x1xf32> to vector<8x1xf32>
    %50 = vector.broadcast %49 : vector<8x1xf32> to vector<8x128xf32>
    %c0_28 = arith.constant 0 : index
    %c0_29 = arith.constant 0 : index
    %51 = vector.load %arg5[%c0_28, %c0_29] : memref<8x128xf32, #tpu.memory_space<vmem>>, vector<8x128xf32>
    tpu.vector_store %arg5[%c0_28, %c0_29], %50 {strides = array<i32>} : memref<8x128xf32, #tpu.memory_space<vmem>>, vector<8x128xf32>,
    return
  }
  func.func @transform_0(%arg0: i32) -> i32 {
    %c0_i32 = arith.constant 0 : i32
    %c0_i32_0 = arith.constant 0 : i32
    return %c0_i32 : i32
  }
  func.func @transform_1(%arg0: i32) -> i32 {
    %c0_i32 = arith.constant 0 : i32
    %c0_i32_0 = arith.constant 0 : i32
    return %c0_i32 : i32
  }
  func.func @transform_2(%arg0: i32) -> (i32, i32, i32) {
    %c0_i32 = arith.constant 0 : i32
    %c0_i32_0 = arith.constant 0 : i32
    %c0_i32_1 = arith.constant 0 : i32
    return %c0_i32, %arg0, %c0_i32_0 : i32, i32, i32
  }
  func.func @transform_3(%arg0: i32) -> (i32, i32, i32) {
    %c0_i32 = arith.constant 0 : i32
    %c0_i32_0 = arith.constant 0 : i32
    %c0_i32_1 = arith.constant 0 : i32
    return %c0_i32, %arg0, %c0_i32_0 : i32, i32, i32
  }
  func.func @transform_4(%arg0: i32) -> (i32, i32) {
    %c0_i32 = arith.constant 0 : i32
    %c0_i32_0 = arith.constant 0 : i32
    return %arg0, %c0_i32 : i32, i32
  }
}

</mosaic_0001>

<llo_original>
// kernel: tpu_custom_call.1
$region0: #{tpu_custom_call.1}
  #allocation0 [shape = 'u32[]', space=smem, size = 0x4, offset = 0x4, fixed_abs, tag = 'smem constant byte address 0x4 - core index']
  #allocation1 [shape = 'u32[72,128]{1,0:T(1,128)}', space=vmem, size = 0x9000, scoped, tag = 'internal scratch']
  %s0 = inlined_call_operand.hbm [shape: f32[4], index: 0, kind: input, shape index: {}]
  %s1 = inlined_call_operand.hbm [shape: f32[4], index: 1, kind: input, shape index: {}]
  %s2 = inlined_call_operand.hbm [shape: f32[4,8,16], index: 2, kind: input, shape index: {}]
  %s3 = inlined_call_operand.hbm [shape: f32[4,8,16], index: 3, kind: input, shape index: {}]
  %s4 = inlined_call_operand.hbm [shape: f32[8,128], index: 4, kind: output, shape index: {}]
  %s5 = sld [smem:[#allocation0]]
  $region42: #{tpu_custom_call.1} parent=0
    _
  %s7 = ssub.s32 1, %s5
  %s8 = scalar_select 0, %s7, %s5
  $region1: #{tpu_custom_call.1} parent=0
    #allocation2 [shape = 'u8[512]{0}', space=smem, size = 0x200, scoped, tag = 'input window, operand 0, single buffered']
    #allocation3 [shape = 's32[1]{0}', space=sflag, size = 0x4, scoped, tag = 'scoped memory for tpu_custom_call.1']
    #allocation4 [shape = 's32[1]{0}', space=sflag, size = 0x4, scoped, tag = 'scoped memory for tpu_custom_call.1']
    #allocation5 [shape = 's32[1]{0}', space=sflag, size = 0x4, scoped, tag = 'scoped memory for tpu_custom_call.1']
    #allocation6 [shape = 'u8[512]{0}', space=smem, size = 0x200, scoped, tag = 'input window, operand 1, single buffered']
    #allocation7 [shape = 's32[1]{0}', space=sflag, size = 0x4, scoped, tag = 'scoped memory for tpu_custom_call.1']
    #allocation8 [shape = 'u8[16384]{0}', space=vmem, size = 0x4000, scoped, tag = 'input window, operand 2, single buffered']
    #allocation9 [shape = 'u8[16384]{0}', space=vmem, size = 0x4000, scoped, tag = 'input window, operand 3, single buffered']
    #allocation10 [shape = 's32[1]{0}', space=sflag, size = 0x4, scoped, tag = 'scoped memory for tpu_custom_call.1']
    #allocation11 [shape = 'u8[4096]{0}', space=vmem, size = 0x1000, scoped, tag = 'output window, operand 0, single buffered']
    %9 = vsyncpa [#allocation5], 0
    %10 = vsyncpa [#allocation7], 0
    %11 = vsyncpa [#allocation3], 0
    %12 = vsyncpa [#allocation10], 0
    %13 = vsyncpa [#allocation4], 0
    // Predicated region
    $region2: #{tpu_custom_call.1} parent=1 // pred_check
      _
    $region3: #{tpu_custom_call.1} parent=1 // pred_check_branch
      %15 = sbr.rel (0) target = $region5
    $region4: #{tpu_custom_call.1} parent=1 // pred_region
      %17 = vsyncadd [#allocation5], 0
      %s19 = sshll.u32 %s0, 4
      %s20 = int_to_ptr.hbm [resolvable:$true] %s19
      %22 = dma.hbm_to_smem %s20, 16, [#allocation2], [#allocation5]
    $region5: #{tpu_custom_call.1} parent=1 // pred_fallthru
      _
    // Predicated region
    $region6: #{tpu_custom_call.1} parent=1 // pred_check
      _
    $region7: #{tpu_custom_call.1} parent=1 // pred_check_branch
      %24 = sbr.rel (0) target = $region9
    $region8: #{tpu_custom_call.1} parent=1 // pred_region
      %26 = vsyncadd [#allocation7], 0
      %s28 = sshll.u32 %s1, 4
      %s29 = int_to_ptr.hbm [resolvable:$true] %s28
      %31 = dma.hbm_to_smem %s29, 16, [#allocation6], [#allocation7]
    $region9: #{tpu_custom_call.1} parent=1 // pred_fallthru
      _
    // Predicated region
    $region10: #{tpu_custom_call.1} parent=1 // pred_check
      _
    $region11: #{tpu_custom_call.1} parent=1 // pred_check_branch
      %33 = sbr.rel (0) target = $region13
    $region12: #{tpu_custom_call.1} parent=1 // pred_region
      %35 = vsyncadd [#allocation3], 0
      %s36 = sshll.u32 %s2, 4
      %s37 = int_to_ptr.hbm [resolvable:$true] %s36
      %s38 = sshll.u32 [#allocation8], 4
      %s39 = int_to_ptr.vmem [resolvable:$true] %s38
      %44 = dma.hbm_to_vmem [thread:$0]  %s37, 512, %s39, [#allocation3], 128, 128, 8
    $region13: #{tpu_custom_call.1} parent=1 // pred_fallthru
      _
    // Predicated region
    $region14: #{tpu_custom_call.1} parent=1 // pred_check
      _
    $region15: #{tpu_custom_call.1} parent=1 // pred_check_branch
      %46 = sbr.rel (0) target = $region17
    $region16: #{tpu_custom_call.1} parent=1 // pred_region
      %48 = vsyncadd [#allocation10], 0
      %s49 = sshll.u32 %s3, 4
      %s50 = int_to_ptr.hbm [resolvable:$true] %s49
      %s51 = sshll.u32 [#allocation9], 4
      %s52 = int_to_ptr.vmem [resolvable:$true] %s51
      %57 = dma.hbm_to_vmem [thread:$0]  %s50, 512, %s52, [#allocation10], 128, 128, 8
    $region17: #{tpu_custom_call.1} parent=1 // pred_fallthru
      _
    // Predicated region
    $region18: #{tpu_custom_call.1} parent=1 // pred_check
      _
    $region19: #{tpu_custom_call.1} parent=1 // pred_check_branch
      %59 = sbr.rel (0) target = $region21
    $region20: #{tpu_custom_call.1} parent=1 // pred_region
      %61 = dma.done [#allocation5], 16
    $region21: #{tpu_custom_call.1} parent=1 // pred_fallthru
      _
    // Predicated region
    $region22: #{tpu_custom_call.1} parent=1 // pred_check
      _
    $region23: #{tpu_custom_call.1} parent=1 // pred_check_branch
      %63 = sbr.rel (0) target = $region25
    $region24: #{tpu_custom_call.1} parent=1 // pred_region
      %65 = dma.done [#allocation7], 16
    $region25: #{tpu_custom_call.1} parent=1 // pred_fallthru
      _
    // Predicated region
    $region26: #{tpu_custom_call.1} parent=1 // pred_check
      _
    $region27: #{tpu_custom_call.1} parent=1 // pred_check_branch
      %67 = sbr.rel (0) target = $region29
    $region28: #{tpu_custom_call.1} parent=1 // pred_region
      %69 = dma.done [#allocation3], 512
    $region29: #{tpu_custom_call.1} parent=1 // pred_fallthru
      _
    // Predicated region
    $region30: #{tpu_custom_call.1} parent=1 // pred_check
      _
    $region31: #{tpu_custom_call.1} parent=1 // pred_check_branch
      %71 = sbr.rel (0) target = $region33
    $region32: #{tpu_custom_call.1} parent=1 // pred_region
      %73 = dma.done [#allocation10], 512
    $region33: #{tpu_custom_call.1} parent=1 // pred_fallthru
      _
    %74 = sfence
    %s75 = sld [smem:[#allocation2]]
    %v76 = vld [vmem:[#allocation8] sm:$0xff]
    %v77 = vstv %s75
    %v78 = vmul.f32 %v77, %v76
    %s79 = sld [smem:[#allocation2 + $0x1]]
    %s80 = scalar_lea.vmem [#allocation8], 8
    %v81 = vld [vmem:[%s80] sm:$0xff]
    %v82 = vstv %s79
    %v83 = vmul.f32 %v82, %v81
    %v84 = vadd.f32 %v78, %v83
    %s85 = sld [smem:[#allocation2 + $0x2]]
    %s86 = scalar_lea.vmem [#allocation8], 16
    %v87 = vld [vmem:[%s86] sm:$0xff]
    %v88 = vstv %s85
    %v89 = vmul.f32 %v88, %v87
    %v90 = vadd.f32 %v84, %v89
    %s91 = sld [smem:[#allocation2 + $0x3]]
    %s92 = scalar_lea.vmem [#allocation8], 24
    %v93 = vld [vmem:[%s92] sm:$0xff]
    %v94 = vstv %s91
    %v95 = vmul.f32 %v94, %v93
    %v96 = vadd.f32 %v90, %v95
    %s97 = sld [smem:[#allocation6]]
    %v98 = vld [vmem:[#allocation9] sm:$0xff]
    %v99 = vstv %s97
    %v100 = vmul.f32 %v99, %v98
    %s101 = sld [smem:[#allocation6 + $0x1]]
    %s102 = scalar_lea.vmem [#allocation9], 8
    %v103 = vld [vmem:[%s102] sm:$0xff]
    %v104 = vstv %s101
    %v105 = vmul.f32 %v104, %v103
    %v106 = vadd.f32 %v100, %v105
    %s107 = sld [smem:[#allocation6 + $0x2]]
    %s108 = scalar_lea.vmem [#allocation9], 16
    %v109 = vld [vmem:[%s108] sm:$0xff]
    %v110 = vstv %s107
    %v111 = vmul.f32 %v110, %v109
    %v112 = vadd.f32 %v106, %v111
    %s113 = sld [smem:[#allocation6 + $0x3]]
    %s114 = scalar_lea.vmem [#allocation9], 24
    %v115 = vld [vmem:[%s114] sm:$0xff]
    %v116 = vstv %s113
    %v117 = vmul.f32 %v116, %v115
    %v118 = vadd.f32 %v112, %v117
    %v119 = vmul.f32 %v96, %v118
    %vm120 = vcmask 130048
    %v121 = vsel %vm120, %v119, 0.0
    %122 = vadd.xlane.f32.xlu0 %v121
    %v123 = vpop.xlane.xlu0 %122
    %124 = vst [vmem:[#allocation11] sm:$0xff] %v123
    // Predicated region
    $region34: #{tpu_custom_call.1} parent=1 // pred_check
      _
    $region35: #{tpu_custom_call.1} parent=1 // pred_check_branch
      %126 = sbr.rel (0) target = $region37
    $region36: #{tpu_custom_call.1} parent=1 // pred_region
      %128 = vsyncadd [#allocation4], 0
      %s130 = sshll.u32 [#allocation11], 4
      %s131 = int_to_ptr.vmem [resolvable:$true] %s130
      %s132 = sshll.u32 %s4, 4
      %s133 = int_to_ptr.hbm [resolvable:$true] %s132
      %135 = dma.vmem_to_hbm [thread:$0]  %s131, 128, %s133, [#allocation4]
    $region37: #{tpu_custom_call.1} parent=1 // pred_fallthru
      _
    // Predicated region
    $region38: #{tpu_custom_call.1} parent=1 // pred_check
      _
    $region39: #{tpu_custom_call.1} parent=1 // pred_check_branch
      %137 = sbr.rel (0) target = $region41
    $region40: #{tpu_custom_call.1} parent=1 // pred_region
      %139 = dma.done [#allocation4], 128
    $region41: #{tpu_custom_call.1} parent=1 // pred_fallthru
      _
    %140 = vsyncpa [#allocation3], 1
    %141 = vsyncpa [#allocation10], 1
    %142 = vsyncpa [#allocation4], 1
    %143 = vsyncpa [#allocation5], 1
    %144 = vsyncpa [#allocation7], 1

</llo_original>
